<compile_context>
chip_gen: v7x
topology: tpu7x:2x2x1
jax: 0.10.0
libtpu: 0.0.40
codegen_flags: <defaults>
</compile_context>

<pallas_src>
import functools

import jax
import jax.numpy as jnp
from jax import lax
from jax.experimental import pallas as pl
from jax.experimental.pallas import tpu as pltpu

_LANE = 128
_SUBLANE = 8
_NUM_CORES = 2  # leading "parallel" grid axis (v7x megacore); harmless on 1-TC chips


def _simse_kernel(p_ref, r_ref, sum_ref, sq_ref, *, tile_rows, rows):
    c = pl.program_id(0)          # core / partial-accumulator index (parallel)
    k = pl.program_id(1)          # reduction step (arbitrary)
    steps = pl.num_programs(1)

    @pl.when(k == 0)
    def _():
        sum_ref[...] = jnp.zeros_like(sum_ref)
        sq_ref[...] = jnp.zeros_like(sq_ref)

    # Logical tile index owned by this (core, step). The index_map clamps the
    # physical block, so an excess step just re-reads the last tile; the row
    # mask below (computed from the *logical* index) zeroes its contribution.
    t = c * steps + k
    valid_rows = rows - t * tile_rows   # <=0 -> fully masked; >=tile_rows -> full tile

    d = r_ref[...].astype(jnp.float32) - p_ref[...].astype(jnp.float32)
    row_id = lax.broadcasted_iota(jnp.int32, (tile_rows, _LANE), 0)
    d = jnp.where(row_id < valid_rows, d, 0.0)

    # Fold the tile into (8,128) vreg-shaped partials with pure VPU adds; the
    # expensive scalar reduce is deferred to the wrapper (done once).
    d3 = d.reshape(tile_rows // _SUBLANE, _SUBLANE, _LANE)
    sum_ref[0] = sum_ref[0] + jnp.sum(d3, axis=0)
    sq_ref[0] = sq_ref[0] + jnp.sum(d3 * d3, axis=0)


def simse(pred, real, *, tile_rows=2048):
    assert pred.shape == real.shape
    n_elems = pred.size  # n from the ORIGINAL tensor, as in torch.numel

    flat_p = pred.reshape(-1)   # keep caller dtype (bf16 stays bf16 in HBM)
    flat_r = real.reshape(-1)
    total = flat_p.shape[0]

    # Only pad when the flat length is not lane-aligned (rare). Identical zero
    # padding of pred and real contributes 0 to both sums; n uses the original
    # numel, so the result is unchanged.
    pad = (-total) % _LANE
    if pad:
        flat_p = jnp.pad(flat_p, (0, pad))
        flat_r = jnp.pad(flat_r, (0, pad))
    rows = (total + pad) // _LANE

    # Tile rows: multiple of 8 sublanes, as large as requested but no larger
    # than the (8-rounded) data, so small inputs don't DMA huge padded blocks.
    rows_padded8 = ((rows + _SUBLANE - 1) // _SUBLANE) * _SUBLANE
    tile_rows = max(_SUBLANE, (tile_rows // _SUBLANE) * _SUBLANE)
    tile_rows = min(tile_rows, rows_padded8)

    p2d = flat_p.reshape(rows, _LANE)
    r2d = flat_r.reshape(rows, _LANE)

    num_tiles = pl.cdiv(rows, tile_rows)
    steps = pl.cdiv(num_tiles, _NUM_CORES)

    def tile_map(c, k):
        # Clamp so excess (core, step) pairs re-read a valid tile; the kernel's
        # logical-index mask makes their contribution exactly zero.
        return (jnp.minimum(c * steps + k, num_tiles - 1), 0)

    kernel = functools.partial(_simse_kernel, tile_rows=tile_rows, rows=rows)

    bytes_per_elem = jnp.dtype(pred.dtype).itemsize
    cost = pl.CostEstimate(
        flops=4 * n_elems,
        transcendentals=0,
        bytes_accessed=2 * n_elems * bytes_per_elem
        + 2 * _NUM_CORES * _SUBLANE * _LANE * 4,
    )

    sum_slabs, sq_slabs = pl.pallas_call(
        kernel,
        out_shape=(
            jax.ShapeDtypeStruct((_NUM_CORES, _SUBLANE, _LANE), jnp.float32),
            jax.ShapeDtypeStruct((_NUM_CORES, _SUBLANE, _LANE), jnp.float32),
        ),
        grid_spec=pltpu.PrefetchScalarGridSpec(
            num_scalar_prefetch=0,
            grid=(_NUM_CORES, steps),
            in_specs=[
                pl.BlockSpec((tile_rows, _LANE), tile_map),
                pl.BlockSpec((tile_rows, _LANE), tile_map),
            ],
            out_specs=(
                pl.BlockSpec((1, _SUBLANE, _LANE), lambda c, k: (c, 0, 0)),
                pl.BlockSpec((1, _SUBLANE, _LANE), lambda c, k: (c, 0, 0)),
            ),
        ),
        compiler_params=pltpu.CompilerParams(
            dimension_semantics=("parallel", "arbitrary")
        ),
        cost_estimate=cost,
    )(p2d, r2d)

    # Single cheap final reduce over the tiny per-core partial slabs.
    s = jnp.sum(sum_slabs)
    sq = jnp.sum(sq_slabs)
    n = jnp.float32(n_elems)
    return sq / n - (s * s) / (n * n)


def simse_ref(pred, real):
    d = real.astype(jnp.float32) - pred.astype(jnp.float32)
    n = d.size
    return jnp.sum(d * d) / n - jnp.sum(d) ** 2 / (n * n)


if __name__ == "__main__":
    key = jax.random.PRNGKey(0)
    k1, k2 = jax.random.split(key)
    shape = (2, 4, 16, 16)  # NCHW, same convention as the PyTorch module
    pred = jax.random.normal(k1, shape, dtype=jnp.float32)
    real = jax.random.normal(k2, shape, dtype=jnp.float32)

    out = jax.block_until_ready(simse(pred, real))
    ref = simse_ref(pred, real)
    assert jnp.allclose(out, ref, rtol=1e-5, atol=1e-6), (out, ref)
    print("KERNEL_OK")
</pallas_src>

<mosaic_0001>
module attributes {stable_mosaic.version = 11 : i64} {
  func.func @_simse_kernel(%arg0: i32, %arg1: i32, %arg2: memref<16x128xf32, #tpu.memory_space<vmem>>, %arg3: memref<16x128xf32, #tpu.memory_space<vmem>>, %arg4: memref<1x8x128xf32, #tpu.memory_space<vmem>>, %arg5: memref<1x8x128xf32, #tpu.memory_space<vmem>>) attributes {dimension_semantics = [#tpu.dimension_semantics<parallel>, #tpu.dimension_semantics<arbitrary>], iteration_bounds = array<i64: 2, 1>, scalar_prefetch = 0 : i64, scratch_operands = 0 : i64, tpu.core_type = #tpu.core_type<tc>, window_params = [{transform_indices = @transform_0, window_bounds = array<i64: 16, 128>}, {transform_indices = @transform_1, window_bounds = array<i64: 16, 128>}, {transform_indices = @transform_2, window_bounds = array<i64: 1, 8, 128>}, {transform_indices = @transform_3, window_bounds = array<i64: 1, 8, 128>}]} {
    %c0_i32 = arith.constant 0 : i32
    %0 = arith.cmpi eq, %arg1, %c0_i32 : i32
    %1 = arith.extui %0 : i1 to i32
    %c0_i32_0 = arith.constant 0 : i32
    %2 = arith.cmpi ne, %1, %c0_i32_0 : i32
    scf.if %2 {
      %cst_19 = arith.constant 0.000000e+00 : f32
      %31 = vector.broadcast %cst_19 : f32 to vector<1x8x128xf32>
      %c0_20 = arith.constant 0 : index
      %c0_21 = arith.constant 0 : index
      %c0_22 = arith.constant 0 : index
      %32 = vector.load %arg4[%c0_20, %c0_21, %c0_22] : memref<1x8x128xf32, #tpu.memory_space<vmem>>, vector<1x8x128xf32>
      tpu.vector_store %arg4[%c0_20, %c0_21, %c0_22], %31 {strides = array<i32>} : memref<1x8x128xf32, #tpu.memory_space<vmem>>, vector<1x8x128xf32>,
      %cst_23 = arith.constant 0.000000e+00 : f32
      %33 = vector.broadcast %cst_23 : f32 to vector<1x8x128xf32>
      %c0_24 = arith.constant 0 : index
      %c0_25 = arith.constant 0 : index
      %c0_26 = arith.constant 0 : index
      %34 = vector.load %arg5[%c0_24, %c0_25, %c0_26] : memref<1x8x128xf32, #tpu.memory_space<vmem>>, vector<1x8x128xf32>
      tpu.vector_store %arg5[%c0_24, %c0_25, %c0_26], %33 {strides = array<i32>} : memref<1x8x128xf32, #tpu.memory_space<vmem>>, vector<1x8x128xf32>,
    } else {
    }
    %c1_i32 = arith.constant 1 : i32
    %3 = arith.muli %arg0, %c1_i32 : i32
    %4 = arith.addi %3, %arg1 : i32
    %c16_i32 = arith.constant 16 : i32
    %5 = arith.muli %4, %c16_i32 : i32
    %c16_i32_1 = arith.constant 16 : i32
    %6 = arith.subi %c16_i32_1, %5 : i32
    %c0 = arith.constant 0 : index
    %c0_2 = arith.constant 0 : index
    %7 = vector.load %arg3[%c0, %c0_2] : memref<16x128xf32, #tpu.memory_space<vmem>>, vector<16x128xf32>
    %c0_3 = arith.constant 0 : index
    %c0_4 = arith.constant 0 : index
    %8 = vector.load %arg2[%c0_3, %c0_4] : memref<16x128xf32, #tpu.memory_space<vmem>>, vector<16x128xf32>
    %9 = arith.subf %7, %8 : vector<16x128xf32>
    %10 = tpu.iota {dimensions = array<i32: 0>} : vector<16x128xi32>
    %11 = vector.broadcast %6 : i32 to vector<16x128xi32>
    %12 = arith.cmpi slt, %10, %11 : vector<16x128xi32>
    %cst = arith.constant 0.000000e+00 : f32
    %13 = vector.broadcast %cst : f32 to vector<16x128xf32>
    %14 = arith.select %12, %9, %13 : vector<16x128xi1>, vector<16x128xf32>
    %15 = vector.shape_cast %14 : vector<16x128xf32> to vector<2x8x128xf32>
    %c0_5 = arith.constant 0 : index
    %c0_6 = arith.constant 0 : index
    %c0_7 = arith.constant 0 : index
    %16 = vector.load %arg4[%c0_5, %c0_6, %c0_7] : memref<1x8x128xf32, #tpu.memory_space<vmem>>, vector<1x8x128xf32>
    %17 = vector.shape_cast %16 : vector<1x8x128xf32> to vector<8x128xf32>
    %cst_8 = arith.constant dense<0.000000e+00> : vector<8x128xf32>
    %18 = vector.multi_reduction <add>, %15, %cst_8 [0] : vector<2x8x128xf32> to vector<8x128xf32>
    %19 = arith.addf %17, %18 : vector<8x128xf32>
    %c0_9 = arith.constant 0 : index
    %c0_10 = arith.constant 0 : index
    %c0_11 = arith.constant 0 : index
    %20 = vector.load %arg4[%c0_9, %c0_10, %c0_11] : memref<1x8x128xf32, #tpu.memory_space<vmem>>, vector<1x8x128xf32>
    %21 = vector.shape_cast %20 : vector<1x8x128xf32> to vector<8x128xf32>
    %22 = vector.shape_cast %19 : vector<8x128xf32> to vector<1x8x128xf32>
    tpu.vector_store %arg4[%c0_9, %c0_10, %c0_11], %22 {strides = array<i32>} : memref<1x8x128xf32, #tpu.memory_space<vmem>>, vector<1x8x128xf32>,
    %c0_12 = arith.constant 0 : index
    %c0_13 = arith.constant 0 : index
    %c0_14 = arith.constant 0 : index
    %23 = vector.load %arg5[%c0_12, %c0_13, %c0_14] : memref<1x8x128xf32, #tpu.memory_space<vmem>>, vector<1x8x128xf32>
    %24 = vector.shape_cast %23 : vector<1x8x128xf32> to vector<8x128xf32>
    %25 = arith.mulf %15, %15 : vector<2x8x128xf32>
    %cst_15 = arith.constant dense<0.000000e+00> : vector<8x128xf32>
    %26 = vector.multi_reduction <add>, %25, %cst_15 [0] : vector<2x8x128xf32> to vector<8x128xf32>
    %27 = arith.addf %24, %26 : vector<8x128xf32>
    %c0_16 = arith.constant 0 : index
    %c0_17 = arith.constant 0 : index
    %c0_18 = arith.constant 0 : index
    %28 = vector.load %arg5[%c0_16, %c0_17, %c0_18] : memref<1x8x128xf32, #tpu.memory_space<vmem>>, vector<1x8x128xf32>
    %29 = vector.shape_cast %28 : vector<1x8x128xf32> to vector<8x128xf32>
    %30 = vector.shape_cast %27 : vector<8x128xf32> to vector<1x8x128xf32>
    tpu.vector_store %arg5[%c0_16, %c0_17, %c0_18], %30 {strides = array<i32>} : memref<1x8x128xf32, #tpu.memory_space<vmem>>, vector<1x8x128xf32>,
    return
  }
  func.func @transform_0(%arg0: i32, %arg1: i32) -> (i32, i32) {
    %c1_i32 = arith.constant 1 : i32
    %0 = arith.muli %arg0, %c1_i32 : i32
    %1 = arith.addi %0, %arg1 : i32
    %c0_i32 = arith.constant 0 : i32
    %2 = arith.minsi %1, %c0_i32 : i32
    %c0_i32_0 = arith.constant 0 : i32
    %c0_i32_1 = arith.constant 0 : i32
    return %2, %c0_i32_0 : i32, i32
  }
  func.func @transform_1(%arg0: i32, %arg1: i32) -> (i32, i32) {
    %c1_i32 = arith.constant 1 : i32
    %0 = arith.muli %arg0, %c1_i32 : i32
    %1 = arith.addi %0, %arg1 : i32
    %c0_i32 = arith.constant 0 : i32
    %2 = arith.minsi %1, %c0_i32 : i32
    %c0_i32_0 = arith.constant 0 : i32
    %c0_i32_1 = arith.constant 0 : i32
    return %2, %c0_i32_0 : i32, i32
  }
  func.func @transform_2(%arg0: i32, %arg1: i32) -> (i32, i32, i32) {
    %c0_i32 = arith.constant 0 : i32
    %c0_i32_0 = arith.constant 0 : i32
    %c0_i32_1 = arith.constant 0 : i32
    return %arg0, %c0_i32, %c0_i32_0 : i32, i32, i32
  }
  func.func @transform_3(%arg0: i32, %arg1: i32) -> (i32, i32, i32) {
    %c0_i32 = arith.constant 0 : i32
    %c0_i32_0 = arith.constant 0 : i32
    %c0_i32_1 = arith.constant 0 : i32
    return %arg0, %c0_i32, %c0_i32_0 : i32, i32, i32
  }
}

</mosaic_0001>

<llo_original>
// kernel: tpu_custom_call.1
$region0: #{tpu_custom_call.1}
  #allocation0 [shape = 'u32[]', space=smem, size = 0x4, offset = 0x4, fixed_abs, tag = 'smem constant byte address 0x4 - core index']
  #allocation1 [shape = 'u32[144,128]{1,0:T(1,128)}', space=vmem, size = 0x12000, scoped, tag = 'internal scratch']
  %s0 = inlined_call_operand.hbm [shape: f32[16,128], index: 0, kind: input, shape index: {}]
  %s1 = inlined_call_operand.hbm [shape: f32[16,128], index: 1, kind: input, shape index: {}]
  %s2 = inlined_call_operand.hbm [shape: f32[2,8,128], index: 2, kind: output, shape index: {0}]
  %s3 = inlined_call_operand.hbm [shape: f32[2,8,128], index: 3, kind: output, shape index: {1}]
  %4 = xla_tuple %s2, %s3
  %s5 = sld [smem:[#allocation0]]
  $region61: #{tpu_custom_call.1} parent=0
    _
  %s7 = ssub.s32 1, %s5
  %s8 = scalar_select 0, %s7, %s5
  $region1: #{tpu_custom_call.1} parent=0
    #allocation2 [shape = 'u8[16384]{0}', space=vmem, size = 0x4000, scoped, tag = 'input window, operand 0']
    #allocation3 [shape = 's32[2]{0}', space=sflag, size = 0x8, scoped, tag = 'scoped memory for tpu_custom_call.1']
    #allocation4 [shape = 's32[2]{0}', space=sflag, size = 0x8, scoped, tag = 'scoped memory for tpu_custom_call.1']
    #allocation5 [shape = 'u8[16384]{0}', space=vmem, size = 0x4000, scoped, tag = 'input window, operand 1']
    #allocation6 [shape = 's32[2]{0}', space=sflag, size = 0x8, scoped, tag = 'scoped memory for tpu_custom_call.1']
    #allocation7 [shape = 'u8[8192]{0}', space=vmem, size = 0x2000, scoped, tag = 'output window, operand 0']
    #allocation8 [shape = 'u8[8192]{0}', space=vmem, size = 0x2000, scoped, tag = 'output window, operand 1']
    #allocation9 [shape = 's32[2]{0}', space=sflag, size = 0x8, scoped, tag = 'scoped memory for tpu_custom_call.1']
    %9 = vsyncpa [#allocation3], 0
    %s10 = scalar_lea.sflag [#allocation3], 1
    %11 = vsyncpa %s10, 0
    %12 = vsyncpa [#allocation6], 0
    %s13 = scalar_lea.sflag [#allocation6], 1
    %14 = vsyncpa %s13, 0
    %15 = vsyncpa [#allocation4], 0
    %s16 = scalar_lea.sflag [#allocation4], 1
    %17 = vsyncpa %s16, 0
    %18 = vsyncpa [#allocation9], 0
    %s19 = scalar_lea.sflag [#allocation9], 1
    %20 = vsyncpa %s19, 0
    loop: start=0, step=1, limit=4
    $region2: #{tpu_custom_call.1} parent=1 // loop_pre_header
      _
    $region3: #{tpu_custom_call.1} parent=1 // loop_header
      %s22 = sphi 0, %s26
      %p23 = scmp.ge.s32.totalorder %s22, 4
      %s29 = sphi 0, %s41
      %s30 = sphi 0, %s37
      %s31 = sphi 0, %s29
      %s32 = sphi 0, %s30
      %s33 = sphi 0, %s31
      %s34 = sphi 0, %s32
      %s50 = sphi 0, %s52
      %s53 = sphi 0, %s50
      %s54 = sphi 0, %s53
      %s70 = sphi 0, %s54
      %s82 = sphi 0, %s84
      %s85 = sphi 0, %s82
      %s86 = sphi 0, %s85
      %s102 = sphi 0, %s86
      %s108 = sphi 0, %s110
      %s111 = sphi 0, %s108
      %s112 = sphi 0, %s111
      %s128 = sphi 0, %s112
      %s134 = sphi 0, %s136
      %s137 = sphi 0, %s134
      %s138 = sphi 0, %s137
      %s154 = sphi 0, %s138
    $region4: #{tpu_custom_call.1} parent=1 // loop_header_branch
      %25 = sbr.rel (%p23) target = $region8
    $region5: #{tpu_custom_call.1} parent=1 // loop_body
      %s27 = ssub.s32 %s22, 1
      %s28 = ssub.s32 %s22, 2
      %s35 = sadd.s32 1, %s30
      %p36 = scmp.ge.s32.totalorder %s35, 1
      %s37 = scalar_select %p36, 0, %s35
      %s38 = sadd.s32 1, %s29
      %s39 = scalar_select %p36, %s38, %s29
      %p40 = scmp.ge.s32.totalorder %s39, 2
      %s41 = scalar_select %p40, 0, %s39
      %s42 = sadd.s32 %s29, %s30
      %p43 = scmp.lt.s32.totalorder %s42, 0
      %s44 = scalar_select %p43, %s42, 0
      %s45 = sadd.s32 %s41, %s37
      %p46 = scmp.lt.s32.totalorder %s45, 0
      %s47 = scalar_select %p46, %s45, 0
      %s48 = ssub.s32 %s44, %s47
      %p49 = scmp.eq.s32.totalorder %s48, 0
      %s51 = sadd.s32 %s50, 1
      %s52 = scalar_select %p49, %s50, %s51
      %p55 = pneg %p49
      %p56 = scmp.eq.s32.totalorder %s22, 1
      %p57 = por %p55, %p56
      %p58 = scmp.ne.s32.totalorder %s50, %s53
      %p59 = scmp.eq.s32.totalorder %s22, 0
      %p60 = por %p58, %p59
      %p61 = scmp.ne.s32.totalorder %s50, %s53
      %p62 = scmp.eq.s32.totalorder %s27, 1
      %p63 = por %p61, %p62
      %p64 = scmp.ne.s32.totalorder %s53, %s54
      %p65 = scmp.eq.s32.totalorder %s27, 0
      %p66 = por %p64, %p65
      %p67 = scmp.ne.s32.totalorder %s53, %s54
      %p68 = scmp.eq.s32.totalorder %s28, 1
      %p69 = por %p67, %p68
      %p71 = scmp.ne.s32.totalorder %s54, %s70
      %p72 = scmp.eq.s32.totalorder %s28, 0
      %p73 = por %p71, %p72
      %s74 = sadd.s32 %s29, %s30
      %p75 = scmp.lt.s32.totalorder %s74, 0
      %s76 = scalar_select %p75, %s74, 0
      %s77 = sadd.s32 %s41, %s37
      %p78 = scmp.lt.s32.totalorder %s77, 0
      %s79 = scalar_select %p78, %s77, 0
      %s80 = ssub.s32 %s76, %s79
      %p81 = scmp.eq.s32.totalorder %s80, 0
      %s83 = sadd.s32 %s82, 1
      %s84 = scalar_select %p81, %s82, %s83
      %p87 = pneg %p81
      %p88 = scmp.eq.s32.totalorder %s22, 1
      %p89 = por %p87, %p88
      %p90 = scmp.ne.s32.totalorder %s82, %s85
      %p91 = scmp.eq.s32.totalorder %s22, 0
      %p92 = por %p90, %p91
      %p93 = scmp.ne.s32.totalorder %s82, %s85
      %p94 = scmp.eq.s32.totalorder %s27, 1
      %p95 = por %p93, %p94
      %p96 = scmp.ne.s32.totalorder %s85, %s86
      %p97 = scmp.eq.s32.totalorder %s27, 0
      %p98 = por %p96, %p97
      %p99 = scmp.ne.s32.totalorder %s85, %s86
      %p100 = scmp.eq.s32.totalorder %s28, 1
      %p101 = por %p99, %p100
      %p103 = scmp.ne.s32.totalorder %s86, %s102
      %p104 = scmp.eq.s32.totalorder %s28, 0
      %p105 = por %p103, %p104
      %s106 = ssub.s32 %s29, %s41
      %p107 = scmp.eq.s32.totalorder %s106, 0
      %s109 = sadd.s32 %s108, 1
      %s110 = scalar_select %p107, %s108, %s109
      %p113 = pneg %p107
      %p114 = scmp.eq.s32.totalorder %s22, 1
      %p115 = por %p113, %p114
      %p116 = scmp.ne.s32.totalorder %s108, %s111
      %p117 = scmp.eq.s32.totalorder %s22, 0
      %p118 = por %p116, %p117
      %p119 = scmp.ne.s32.totalorder %s108, %s111
      %p120 = scmp.eq.s32.totalorder %s27, 1
      %p121 = por %p119, %p120
      %p122 = scmp.ne.s32.totalorder %s111, %s112
      %p123 = scmp.eq.s32.totalorder %s27, 0
      %p124 = por %p122, %p123
      %p125 = scmp.ne.s32.totalorder %s111, %s112
      %p126 = scmp.eq.s32.totalorder %s28, 1
      %p127 = por %p125, %p126
      %p129 = scmp.ne.s32.totalorder %s112, %s128
      %p130 = scmp.eq.s32.totalorder %s28, 0
      %p131 = por %p129, %p130
      %s132 = ssub.s32 %s29, %s41
      %p133 = scmp.eq.s32.totalorder %s132, 0
      %s135 = sadd.s32 %s134, 1
      %s136 = scalar_select %p133, %s134, %s135
      %p139 = pneg %p133
      %p140 = scmp.eq.s32.totalorder %s22, 1
      %p141 = por %p139, %p140
      %p142 = scmp.ne.s32.totalorder %s134, %s137
      %p143 = scmp.eq.s32.totalorder %s22, 0
      %p144 = por %p142, %p143
      %p145 = scmp.ne.s32.totalorder %s134, %s137
      %p146 = scmp.eq.s32.totalorder %s27, 1
      %p147 = por %p145, %p146
      %p148 = scmp.ne.s32.totalorder %s137, %s138
      %p149 = scmp.eq.s32.totalorder %s27, 0
      %p150 = por %p148, %p149
      %p151 = scmp.ne.s32.totalorder %s137, %s138
      %p152 = scmp.eq.s32.totalorder %s28, 1
      %p153 = por %p151, %p152
      %p155 = scmp.ne.s32.totalorder %s138, %s154
      %p156 = scmp.eq.s32.totalorder %s28, 0
      %p157 = por %p155, %p156
      %p158 = scmp.le.s32.totalorder 1, %s22
      %p159 = scmp.lt.s32.totalorder %s22, 3
      %p160 = pnand %p158, %p159
      %p161 = pneg %p160
      // Predicated region
      $region9: #{tpu_custom_call.1} parent=5 // pred_check
        _
      $region10: #{tpu_custom_call.1} parent=5 // pred_check_branch
        %163 = sbr.rel (%p160) target = $region12
      $region11: #{tpu_custom_call.1} parent=5 // pred_region
        %s164 = ssub.s32 %s22, 1
      $region12: #{tpu_custom_call.1} parent=5 // pred_fallthru
        _
      %p165 = scmp.lt.s32.totalorder %s22, 2
      // Predicated region
      $region13: #{tpu_custom_call.1} parent=5 // pred_check
        %p166 = pneg %p165
      $region14: #{tpu_custom_call.1} parent=5 // pred_check_branch
        %168 = sbr.rel (%p166) target = $region16
      $region15: #{tpu_custom_call.1} parent=5 // pred_region
        // Predicated region
        $region17: #{tpu_custom_call.1} parent=15 // pred_check
          %p169 = pneg %p60
        $region18: #{tpu_custom_call.1} parent=15 // pred_check_branch
          %171 = sbr.rel (%p169) target = $region20
        $region19: #{tpu_custom_call.1} parent=15 // pred_region
          %s172 = sand.u32 %s50, 1
          %s173 = scalar_lea.sflag [#allocation3], %s172
          %s174 = sand.u32 %s50, 1
          %s175 = smul.addr %s174, 16
          %s176 = scalar_lea.vmem [#allocation2], %s175
          %s177 = sadd.s32 %s29, %s30
          %p178 = scmp.lt.s32.totalorder %s177, 0
          %s179 = scalar_select %p178, %s177, 0
          %s180 = smul.u32 2, %s179
          %s182 = ssub.s32 256, 256
          %183 = vsyncadd %s173, %s182
          %s184 = smul.addr %s180, 128
          %s185 = scalar_lea.hbm %s0, %s184
          %s186 = sshll.u32 %s176, 4
          %s187 = int_to_ptr.vmem [resolvable:$true] %s186
          %192 = dma.hbm_to_vmem [thread:$0]  %s185, 256, %s187, %s173, 128, 128, 8
        $region20: #{tpu_custom_call.1} parent=15 // pred_fallthru
          _
        // Predicated region
        $region21: #{tpu_custom_call.1} parent=15 // pred_check
          %p193 = pneg %p92
        $region22: #{tpu_custom_call.1} parent=15 // pred_check_branch
          %195 = sbr.rel (%p193) target = $region24
        $region23: #{tpu_custom_call.1} parent=15 // pred_region
          %s196 = sand.u32 %s82, 1
          %s197 = scalar_lea.sflag [#allocation6], %s196
          %s198 = sand.u32 %s82, 1
          %s199 = smul.addr %s198, 16
          %s200 = scalar_lea.vmem [#allocation5], %s199
          %s201 = sadd.s32 %s29, %s30
          %p202 = scmp.lt.s32.totalorder %s201, 0
          %s203 = scalar_select %p202, %s201, 0
          %s204 = smul.u32 2, %s203
          %s206 = ssub.s32 256, 256
          %207 = vsyncadd %s197, %s206
          %s208 = smul.addr %s204, 128
          %s209 = scalar_lea.hbm %s1, %s208
          %s210 = sshll.u32 %s200, 4
          %s211 = int_to_ptr.vmem [resolvable:$true] %s210
          %216 = dma.hbm_to_vmem [thread:$0]  %s209, 256, %s211, %s197, 128, 128, 8
        $region24: #{tpu_custom_call.1} parent=15 // pred_fallthru
          _
      $region16: #{tpu_custom_call.1} parent=5 // pred_fallthru
        _
      %p217 = scmp.le.s32.totalorder 1, %s22
      %p218 = scmp.lt.s32.totalorder %s22, 3
      %p219 = pnand %p217, %p218
      %p220 = pneg %p219
      // Predicated region
      $region25: #{tpu_custom_call.1} parent=5 // pred_check
        _
      $region26: #{tpu_custom_call.1} parent=5 // pred_check_branch
        %222 = sbr.rel (%p219) target = $region28
      $region27: #{tpu_custom_call.1} parent=5 // pred_region
        %s223 = ssub.s32 %s22, 1
        %s224 = sand.u32 %s53, 1
        %s225 = scalar_lea.sflag [#allocation3], %s224
        %s226 = sand.u32 %s53, 1
        %s227 = smul.addr %s226, 16
        %s228 = scalar_lea.vmem [#allocation2], %s227
        // Predicated region
        $region29: #{tpu_custom_call.1} parent=27 // pred_check
          %p229 = pneg %p66
        $region30: #{tpu_custom_call.1} parent=27 // pred_check_branch
          %231 = sbr.rel (%p229) target = $region32
        $region31: #{tpu_custom_call.1} parent=27 // pred_region
          %232 = dma.done %s225, 256
        $region32: #{tpu_custom_call.1} parent=27 // pred_fallthru
          _
        %s233 = sand.u32 %s85, 1
        %s234 = scalar_lea.sflag [#allocation6], %s233
        %s235 = sand.u32 %s85, 1
        %s236 = smul.addr %s235, 16
        %s237 = scalar_lea.vmem [#allocation5], %s236
        // Predicated region
        $region33: #{tpu_custom_call.1} parent=27 // pred_check
          %p238 = pneg %p98
        $region34: #{tpu_custom_call.1} parent=27 // pred_check_branch
          %240 = sbr.rel (%p238) target = $region36
        $region35: #{tpu_custom_call.1} parent=27 // pred_region
          %241 = dma.done %s234, 256
        $region36: #{tpu_custom_call.1} parent=27 // pred_fallthru
          _
        %s242 = sand.u32 %s53, 1
        %s243 = scalar_lea.sflag [#allocation3], %s242
        %s244 = sand.u32 %s53, 1
        %s245 = smul.addr %s244, 16
        %s246 = scalar_lea.vmem [#allocation2], %s245
        %p247 = pneg %p66
        %p248 = pneg %p63
        %s249 = sand.u32 %s85, 1
        %s250 = scalar_lea.sflag [#allocation6], %s249
        %s251 = sand.u32 %s85, 1
        %s252 = smul.addr %s251, 16
        %s253 = scalar_lea.vmem [#allocation5], %s252
        %p254 = pneg %p98
        %p255 = pneg %p95
        %p256 = pneg %p124
        %p257 = pneg %p121
        %s258 = sand.u32 %s111, 1
        %s259 = scalar_lea.sflag [#allocation4], %s258
        %s260 = sand.u32 %s111, 1
        %s261 = smul.addr %s260, 8
        %s262 = scalar_lea.vmem [#allocation7], %s261
        %p263 = pneg %p150
        %p264 = pneg %p147
        %s265 = sand.u32 %s137, 1
        %s266 = scalar_lea.sflag [#allocation9], %s265
        %s267 = sand.u32 %s137, 1
        %s268 = smul.addr %s267, 8
        %s269 = scalar_lea.vmem [#allocation8], %s268
        %s270 = sadd.s32 %s31, %s32
        %p271 = scmp.lt.s32.totalorder %s270, 0
        %s272 = scalar_select %p271, %s270, 0
        %s273 = smul.u32 2, %s272
        %s274 = sadd.s32 %s31, %s32
        %p275 = scmp.lt.s32.totalorder %s274, 0
        %s276 = scalar_select %p275, %s274, 0
        %s277 = smul.u32 2, %s276
        %p278 = scmp.eq.s32.totalorder %s32, 0
        // Predicated region
        $region37: #{tpu_custom_call.1} parent=27 // pred_check
          %p279 = pneg %p278
        $region38: #{tpu_custom_call.1} parent=27 // pred_check_branch
          %281 = sbr.rel (%p279) target = $region40
        $region39: #{tpu_custom_call.1} parent=27 // pred_region
          %282 = vst [vmem:[%s262] sm:$0xff] 0.0
          %283 = vst [vmem:[%s269] sm:$0xff] 0.0
        $region40: #{tpu_custom_call.1} parent=27 // pred_fallthru
          _
        %s284 = sadd.s32 %s31, %s32
        %s285 = smul.u32 %s284, 16
        %s286 = ssub.s32 16, %s285
        %v287 = vld [vmem:[%s237] sm:$0xff]
        %v288 = vld [vmem:[%s237 + $0x8] sm:$0xff]
        %v289 = vld [vmem:[%s228] sm:$0xff]
        %v290 = vld [vmem:[%s228 + $0x8] sm:$0xff]
        %v291 = vsub.f32 %v287, %v289
        %v292 = vsub.f32 %v288, %v290
        %v293 = vlaneseq
        %v294 = vshrl.u32 %v293, 7
        %v295 = vadd.s32 %v294, 8
        %v296 = vstv %s286
        %vm297 = vcmp.lt.s32.totalorder %v294, %v296
        %vm298 = vcmp.lt.s32.totalorder %v295, %v296
        %v299 = vsel %vm297, %v291, 0.0
        %v300 = vsel %vm298, %v292, 0.0
        %v301 = vld [vmem:[%s262] sm:$0xff]
        %v302 = vadd.f32 %v299, %v300
        %v303 = vadd.f32 %v301, %v302
        %304 = vst [vmem:[%s262] sm:$0xff] %v303
        %v305 = vld [vmem:[%s269] sm:$0xff]
        %v306 = vmul.f32 %v299, %v299
        %v307 = vmul.f32 %v300, %v300
        %v308 = vadd.f32 %v306, %v307
        %v309 = vadd.f32 %v305, %v308
        %310 = vst [vmem:[%s269] sm:$0xff] %v309
        %s311 = sand.u32 %s111, 1
        %s312 = scalar_lea.sflag [#allocation4], %s311
        %s313 = sand.u32 %s111, 1
        %s314 = smul.addr %s313, 8
        %s315 = scalar_lea.vmem [#allocation7], %s314
        %s316 = sand.u32 %s137, 1
        %s317 = scalar_lea.sflag [#allocation9], %s316
        %s318 = sand.u32 %s137, 1
        %s319 = smul.addr %s318, 8
        %s320 = scalar_lea.vmem [#allocation8], %s319
        // Predicated region
        $region41: #{tpu_custom_call.1} parent=27 // pred_check
          %p321 = pneg %p121
        $region42: #{tpu_custom_call.1} parent=27 // pred_check_branch
          %323 = sbr.rel (%p321) target = $region44
        $region43: #{tpu_custom_call.1} parent=27 // pred_region
          %s325 = ssub.s32 128, 128
          %326 = vsyncadd %s312, %s325
          %s327 = smul.addr %s31, 128
          %s328 = scalar_lea.hbm %s2, %s327
          %s330 = sshll.u32 %s315, 4
          %s331 = int_to_ptr.vmem [resolvable:$true] %s330
          %333 = dma.vmem_to_hbm [thread:$0]  %s331, 128, %s328, %s312
        $region44: #{tpu_custom_call.1} parent=27 // pred_fallthru
          _
        // Predicated region
        $region45: #{tpu_custom_call.1} parent=27 // pred_check
          %p334 = pneg %p147
        $region46: #{tpu_custom_call.1} parent=27 // pred_check_branch
          %336 = sbr.rel (%p334) target = $region48
        $region47: #{tpu_custom_call.1} parent=27 // pred_region
          %s338 = ssub.s32 128, 128
          %339 = vsyncadd %s317, %s338
          %s340 = smul.addr %s31, 128
          %s341 = scalar_lea.hbm %s3, %s340
          %s343 = sshll.u32 %s320, 4
          %s344 = int_to_ptr.vmem [resolvable:$true] %s343
          %346 = dma.vmem_to_hbm [thread:$0]  %s344, 128, %s341, %s317
        $region48: #{tpu_custom_call.1} parent=27 // pred_fallthru
          _
      $region28: #{tpu_custom_call.1} parent=5 // pred_fallthru
        _
      %p347 = scmp.le.s32.totalorder 2, %s22
      // Predicated region
      $region49: #{tpu_custom_call.1} parent=5 // pred_check
        %p348 = pneg %p347
      $region50: #{tpu_custom_call.1} parent=5 // pred_check_branch
        %350 = sbr.rel (%p348) target = $region52
      $region51: #{tpu_custom_call.1} parent=5 // pred_region
        %s351 = ssub.s32 %s22, 2
        // Predicated region
        $region53: #{tpu_custom_call.1} parent=51 // pred_check
          %p352 = pneg %p127
        $region54: #{tpu_custom_call.1} parent=51 // pred_check_branch
          %354 = sbr.rel (%p352) target = $region56
        $region55: #{tpu_custom_call.1} parent=51 // pred_region
          %s355 = sand.u32 %s112, 1
          %s356 = scalar_lea.sflag [#allocation4], %s355
          %s357 = sand.u32 %s112, 1
          %s358 = smul.addr %s357, 8
          %s359 = scalar_lea.vmem [#allocation7], %s358
          %360 = dma.done %s356, 128
        $region56: #{tpu_custom_call.1} parent=51 // pred_fallthru
          _
        // Predicated region
        $region57: #{tpu_custom_call.1} parent=51 // pred_check
          %p361 = pneg %p153
        $region58: #{tpu_custom_call.1} parent=51 // pred_check_branch
          %363 = sbr.rel (%p361) target = $region60
        $region59: #{tpu_custom_call.1} parent=51 // pred_region
          %s364 = sand.u32 %s138, 1
          %s365 = scalar_lea.sflag [#allocation9], %s364
          %s366 = sand.u32 %s138, 1
          %s367 = smul.addr %s366, 8
          %s368 = scalar_lea.vmem [#allocation8], %s367
          %369 = dma.done %s365, 128
        $region60: #{tpu_custom_call.1} parent=51 // pred_fallthru
          _
      $region52: #{tpu_custom_call.1} parent=5 // pred_fallthru
        _
    $region6: #{tpu_custom_call.1} parent=1 // loop_footer
      %s26 = sadd.s32 1, %s22
    $region7: #{tpu_custom_call.1} parent=1 // loop_footer_branch
      %21 = sbr.rel target = $region3
    $region8: #{tpu_custom_call.1} parent=1 // loop_exit
      _
    %370 = vsyncpa [#allocation3], 1
    %s371 = scalar_lea.sflag [#allocation3], 1
    %372 = vsyncpa %s371, 1
    %373 = vsyncpa [#allocation6], 1
    %s374 = scalar_lea.sflag [#allocation6], 1
    %375 = vsyncpa %s374, 1
    %376 = vsyncpa [#allocation4], 1
    %s377 = scalar_lea.sflag [#allocation4], 1
    %378 = vsyncpa %s377, 1
    %379 = vsyncpa [#allocation9], 1
    %s380 = scalar_lea.sflag [#allocation9], 1
    %381 = vsyncpa %s380, 1

</llo_original>
